<compile_context>
chip_gen: v6e
topology: v6e:2x2x1
jax: 0.10.0
libtpu: 0.0.40
codegen_flags: <defaults>
</compile_context>

<pallas_src>
import functools

import numpy as np
import jax
import jax.numpy as jnp
from jax.experimental import pallas as pl
from jax.experimental.pallas import tpu as pltpu


# -----------------------------------------------------------------------------
# Tile sizing / VMEM budget (bytes-based, generation-safe)
# -----------------------------------------------------------------------------
_TARGET_TILE_BYTES = 2 << 20     # ~2 MiB per-stream tile: amortizes ~0.35 us per grid step
_VMEM_STREAM_BUDGET = 24 << 20   # double-buffered big-stream budget (headroom under 32 MiB)
_VMEM_LIMIT_BYTES = 32 << 20     # explicit scoped-VMEM limit, safe on v5e/v6e/v7x


def _pick_tile(B, N, n_big_streams, itemsize=4):
    """Lane tile TN: multiple of 128 dividing N, ~target bytes per tile, >=2 grid steps."""
    # TODO(synk): if N is not a multiple of 128 we fall back to the full row (single-step
    # grid); padding N would require a wrapper-side copy which we deliberately avoid.
    if N % 128 != 0:
        return N
    target_tn = max(128, _TARGET_TILE_BYTES // (itemsize * B))
    cap_tn = max(128, _VMEM_STREAM_BUDGET // (2 * n_big_streams * itemsize * B))
    max_tn = min(target_tn, cap_tn, N // 2) if N >= 256 else N
    max_tn = max(128, (max_tn // 128) * 128)
    for t in range(max_tn, 127, -128):
        if N % t == 0:
            return t
    return 128


def _vmem_full():
    return pl.BlockSpec(memory_space=pltpu.MemorySpace.VMEM)


# -----------------------------------------------------------------------------
# Kernels
# -----------------------------------------------------------------------------
def _c_noise_from_sigma(M, s, u):
    """c_noise = M - 1 - argmin_j |s - u_j| (first occurrence, like torch argmin)."""
    dist = jnp.abs(s - u)                                # (B, U_pad)
    dmin = jnp.min(dist, axis=-1, keepdims=True)         # (B, 1)
    iota = jax.lax.broadcasted_iota(jnp.int32, dist.shape, 1)
    idx = jnp.min(jnp.where(dist == dmin, iota, dist.shape[-1]),
                  axis=-1, keepdims=True)                # (B, 1) int32, first argmin
    return jnp.float32(M - 1) - idx.astype(jnp.float32)


def _model_in_cnoise_kernel(M, sigma_ref, u_ref, x_ref, o_ref, cn_ref):
    """model_in = rsqrt(sigma^2+1) * x; c_noise computed once on the first grid step."""
    s = sigma_ref[...]                                   # (B, 1) f32
    c_in = jax.lax.rsqrt(s * s + 1.0)                    # EUP rsqrt (free slot)
    o_ref[...] = c_in * x_ref[...]

    @pl.when(pl.program_id(0) == 0)
    def _():
        cn_ref[...] = _c_noise_from_sigma(M, s, u_ref[...])


def _c_noise_kernel(M, sigma_ref, u_ref, cn_ref):
    """Standalone c_noise kernel (round_sigma_index API; not on the hot path)."""
    cn_ref[...] = _c_noise_from_sigma(M, sigma_ref[...], u_ref[...])


def _denoise_kernel(sigma_ref, x_ref, fx_ref, o_ref):
    """D_x = c_skip*x + c_out*F_x = x - sigma * F_x[:, :C] (fx block is first half only)."""
    s = sigma_ref[...]                                   # (B, 1)
    o_ref[...] = x_ref[...] - s * fx_ref[...]


# -----------------------------------------------------------------------------
# Single-jit op wrappers (reshape + pallas_call + reshape fused under one jit)
# -----------------------------------------------------------------------------
def _sigma_col(sigma, B):
    sigma = jnp.asarray(sigma, jnp.float32).reshape(-1)
    if sigma.shape[0] == 1 and B > 1:
        sigma = jnp.broadcast_to(sigma, (B,))
    return sigma.reshape(B, 1)


@functools.partial(jax.jit, static_argnames=("M",))
def _precondition_inputs_jit(x, sigma, u_pad, *, M):
    x = jnp.asarray(x, jnp.float32)
    B, C, H, W = x.shape
    N = C * H * W
    sig_col = _sigma_col(sigma, B)
    x2d = x.reshape(B, N)                                 # free reshape, no transpose
    tn = _pick_tile(B, N, n_big_streams=2)                # big streams: x, model_in

    model_in2d, c_noise = pl.pallas_call(
        functools.partial(_model_in_cnoise_kernel, M),
        out_shape=(jax.ShapeDtypeStruct((B, N), jnp.float32),
                   jax.ShapeDtypeStruct((B, 1), jnp.float32)),
        grid=(N // tn,),
        in_specs=[pl.BlockSpec((B, 1), lambda j: (0, 0)),
                  pl.BlockSpec(u_pad.shape, lambda j: (0, 0)),
                  pl.BlockSpec((B, tn), lambda j: (0, j))],
        out_specs=(pl.BlockSpec((B, tn), lambda j: (0, j)),
                   # c_noise block is resident across the grid axis -> axis is "arbitrary"
                   pl.BlockSpec((B, 1), lambda j: (0, 0))),
        compiler_params=pltpu.CompilerParams(
            dimension_semantics=("arbitrary",),
            vmem_limit_bytes=_VMEM_LIMIT_BYTES),
    )(sig_col, u_pad, x2d)

    return model_in2d.reshape(B, C, H, W), c_noise.reshape(-1)


@jax.jit
def _denoise_jit(x, sigma, F_x):
    x = jnp.asarray(x, jnp.float32)
    F_x = jnp.asarray(F_x, jnp.float32)
    B, C, H, W = x.shape
    N = C * H * W
    sig_col = _sigma_col(sigma, B)
    x2d = x.reshape(B, N)
    fx2d = F_x.reshape(B, 2 * N)                          # free reshape; first half read in-kernel
    tn = _pick_tile(B, N, n_big_streams=3)                # big streams: x, fx, out

    d2d = pl.pallas_call(
        _denoise_kernel,
        out_shape=jax.ShapeDtypeStruct((B, N), jnp.float32),
        grid=(N // tn,),
        in_specs=[pl.BlockSpec((B, 1), lambda j: (0, 0)),
                  pl.BlockSpec((B, tn), lambda j: (0, j)),
                  # fx2d is (B, 2N); block indices j < N//tn address exactly F_x[:, :C]
                  # (first half) with no wrapper-side slice copy.
                  pl.BlockSpec((B, tn), lambda j: (0, j))],
        out_specs=pl.BlockSpec((B, tn), lambda j: (0, j)),
        compiler_params=pltpu.CompilerParams(
            dimension_semantics=("parallel",),
            vmem_limit_bytes=_VMEM_LIMIT_BYTES),
    )(sig_col, x2d, fx2d)
    return d2d.reshape(B, C, H, W)


@functools.partial(jax.jit, static_argnames=("M",))
def _round_sigma_index_jit(sigma, u_pad, *, M):
    sigma = jnp.asarray(sigma, jnp.float32).reshape(-1, 1)
    c_noise = pl.pallas_call(
        functools.partial(_c_noise_kernel, M),
        out_shape=jax.ShapeDtypeStruct((sigma.shape[0], 1), jnp.float32),
        in_specs=[_vmem_full(), _vmem_full()],
        out_specs=_vmem_full(),
    )(sigma, u_pad)
    return (jnp.float32(M - 1) - c_noise.reshape(-1)).astype(jnp.int32)


# -----------------------------------------------------------------------------
# Module wrapper (PyTorch NCHW interface, forward semantics of iDDPMPrecond)
# -----------------------------------------------------------------------------
class IDDPMPrecondPallas:
    def __init__(self, img_resolution, img_channels, label_dim=0, use_fp16=False,
                 C_1=0.001, C_2=0.008, M=1000):
        self.img_resolution = img_resolution
        self.img_channels = img_channels
        self.label_dim = label_dim
        self.use_fp16 = use_fp16            # TODO(synk): ignored; kernels stream f32 on TPU
        self.C_1 = C_1
        self.C_2 = C_2
        self.M = M

        # u table: same recursion as the torch __init__ (host / init-time, numpy).
        u = np.zeros(M + 1, dtype=np.float64)
        for j in range(M, 0, -1):
            ratio = max(self._alpha_bar(j - 1) / self._alpha_bar(j), C_1)
            u[j - 1] = np.sqrt((u[j] ** 2 + 1.0) / ratio - 1.0)
        self.u = jnp.asarray(u, dtype=jnp.float32)
        self.sigma_min = float(u[M - 1])
        self.sigma_max = float(u[0])

        # Lane-padded u table for the argmin: (1, U_pad); pad with +huge so padded
        # slots never win the argmin.
        u_pad_len = ((M + 1 + 127) // 128) * 128
        u_pad = np.full((1, u_pad_len), 3.0e38, dtype=np.float32)
        u_pad[0, : M + 1] = u.astype(np.float32)
        self.u_pad = jnp.asarray(u_pad)

    def _alpha_bar(self, j):
        return float(np.sin(0.5 * np.pi * j / self.M / (self.C_2 + 1.0)) ** 2)

    def round_sigma_index(self, sigma):
        """Index of the nearest u entry (== round_sigma(sigma, return_index=True))."""
        return _round_sigma_index_jit(sigma, self.u_pad, M=self.M)

    def precondition_inputs(self, x, sigma):
        """Returns (c_in * x, c_noise) — exactly what the backbone model would consume."""
        return _precondition_inputs_jit(x, sigma, self.u_pad, M=self.M)

    def __call__(self, x, sigma, F_x, class_labels=None, force_fp32=False):
        """
        x:   (B, C, H, W)      sigma: scalar or (B,)
        F_x: (B, 2C, H, W)     output of the backbone model.
        Returns D_x = c_skip*x + c_out*F_x[:, :C]   (c_skip=1, c_out=-sigma).

        TODO(synk): in the original module F_x = self.model(c_in*x, c_noise, labels);
        the DhariwalUNet backbone is out of scope for a Pallas kernel, so F_x is
        supplied and __call__ only runs the output-side combination (no dead
        precondition_inputs pass).
        """
        # label_dim == 0 -> unconditional; class_labels only feed the (absent) backbone.
        return _denoise_jit(x, sigma, F_x)


if __name__ == "__main__":
    B, C, R = 2, 4, 16
    key = jax.random.PRNGKey(0)
    kx, ks, kf = jax.random.split(key, 3)

    model = IDDPMPrecondPallas(img_resolution=R, img_channels=C)

    x = jax.random.normal(kx, (B, C, R, R), dtype=jnp.float32)
    sigma = jax.random.uniform(ks, (B,), jnp.float32,
                               minval=model.sigma_min, maxval=model.sigma_max)
    # TODO(synk): deterministic stand-in for the DhariwalUNet output F_x (B, 2C, H, W);
    # the backbone itself is not implemented here.
    F_x = jax.random.normal(kf, (B, 2 * C, R, R), dtype=jnp.float32)

    model_in, c_noise = model.precondition_inputs(x, sigma)
    D_x = model(x, sigma, F_x)
    D_x, model_in, c_noise = jax.block_until_ready((D_x, model_in, c_noise))

    # Pure-JAX reference of the preconditioning math.
    sig_r = sigma.reshape(B, 1, 1, 1)
    ref_model_in = x / jnp.sqrt(sig_r ** 2 + 1.0)
    ref_idx = jnp.argmin(jnp.abs(sigma.reshape(B, 1) - model.u.reshape(1, -1)), axis=1)
    ref_c_noise = (model.M - 1 - ref_idx).astype(jnp.float32)
    ref_D_x = x - sig_r * F_x[:, :C]

    assert D_x.shape == (B, C, R, R) and D_x.dtype == jnp.float32
    assert model_in.shape == (B, C, R, R) and c_noise.shape == (B,)
    assert bool(jnp.all(jnp.isfinite(D_x)))
    np.testing.assert_allclose(np.asarray(model_in), np.asarray(ref_model_in),
                               rtol=1e-5, atol=1e-5)
    np.testing.assert_allclose(np.asarray(D_x), np.asarray(ref_D_x),
                               rtol=1e-5, atol=1e-3)
    assert bool(jnp.all(c_noise == ref_c_noise))
    ridx = jax.block_until_ready(model.round_sigma_index(sigma))
    assert bool(jnp.all(ridx == ref_idx.astype(jnp.int32)))
    print("KERNEL_OK")
</pallas_src>

<mosaic_0001>
module attributes {stable_mosaic.version = 11 : i64} {
  func.func @_model_in_cnoise_kernel(%arg0: i32, %arg1: memref<2x1xf32, #tpu.memory_space<vmem>>, %arg2: memref<1x1024xf32, #tpu.memory_space<vmem>>, %arg3: memref<2x512xf32, #tpu.memory_space<vmem>>, %arg4: memref<2x512xf32, #tpu.memory_space<vmem>>, %arg5: memref<2x1xf32, #tpu.memory_space<vmem>>) attributes {dimension_semantics = [#tpu.dimension_semantics<arbitrary>], iteration_bounds = array<i64: 2>, scalar_prefetch = 0 : i64, scratch_operands = 0 : i64, tpu.core_type = #tpu.core_type<tc>, window_params = [{pipeline_mode = #tpu.pipeline_mode<synchronous>, transform_indices = @transform_0, window_bounds = array<i64: 2, 1>}, {pipeline_mode = #tpu.pipeline_mode<synchronous>, transform_indices = @transform_1, window_bounds = array<i64: 1, 1024>}, {transform_indices = @transform_2, window_bounds = array<i64: 2, 512>}, {transform_indices = @transform_3, window_bounds = array<i64: 2, 512>}, {pipeline_mode = #tpu.pipeline_mode<synchronous>, transform_indices = @transform_4, window_bounds = array<i64: 2, 1>}]} {
    %c0 = arith.constant 0 : index
    %c0_0 = arith.constant 0 : index
    %0 = vector.load %arg1[%c0, %c0_0] : memref<2x1xf32, #tpu.memory_space<vmem>>, vector<2x1xf32>
    %1 = arith.mulf %0, %0 : vector<2x1xf32>
    %cst = arith.constant 1.000000e+00 : f32
    %2 = vector.broadcast %cst : f32 to vector<2x1xf32>
    %3 = arith.addf %1, %2 : vector<2x1xf32>
    %4 = math.rsqrt %3 : vector<2x1xf32>
    %c0_1 = arith.constant 0 : index
    %c0_2 = arith.constant 0 : index
    %5 = vector.load %arg3[%c0_1, %c0_2] : memref<2x512xf32, #tpu.memory_space<vmem>>, vector<2x512xf32>
    %6 = vector.broadcast %4 : vector<2x1xf32> to vector<2x512xf32>
    %7 = arith.mulf %6, %5 : vector<2x512xf32>
    %c0_3 = arith.constant 0 : index
    %c0_4 = arith.constant 0 : index
    %8 = vector.load %arg4[%c0_3, %c0_4] : memref<2x512xf32, #tpu.memory_space<vmem>>, vector<2x512xf32>
    tpu.vector_store %arg4[%c0_3, %c0_4], %7 {strides = array<i32>} : memref<2x512xf32, #tpu.memory_space<vmem>>, vector<2x512xf32>,
    %c0_i32 = arith.constant 0 : i32
    %9 = arith.cmpi eq, %arg0, %c0_i32 : i32
    %10 = arith.extui %9 : i1 to i32
    %c0_i32_5 = arith.constant 0 : i32
    %11 = arith.cmpi ne, %10, %c0_i32_5 : i32
    scf.if %11 {
      %c0_6 = arith.constant 0 : index
      %c0_7 = arith.constant 0 : index
      %12 = vector.load %arg2[%c0_6, %c0_7] : memref<1x1024xf32, #tpu.memory_space<vmem>>, vector<1x1024xf32>
      %13 = vector.broadcast %0 : vector<2x1xf32> to vector<2x1024xf32>
      %14 = vector.broadcast %12 : vector<1x1024xf32> to vector<2x1024xf32>
      %15 = arith.subf %13, %14 : vector<2x1024xf32>
      %16 = math.absf %15 : vector<2x1024xf32>
      %cst_8 = arith.constant dense<0x7F800000> : vector<2xf32>
      %17 = vector.multi_reduction <minimumf>, %16, %cst_8 [1] : vector<2x1024xf32> to vector<2xf32>
      %18 = vector.shape_cast %17 : vector<2xf32> to vector<2x1xf32>
      %19 = tpu.iota {dimensions = array<i32: 1>} : vector<2x1024xi32>
      %20 = vector.broadcast %18 : vector<2x1xf32> to vector<2x1024xf32>
      %21 = arith.cmpf oeq, %16, %20 : vector<2x1024xf32>
      %c1024_i32 = arith.constant 1024 : i32
      %22 = vector.broadcast %c1024_i32 : i32 to vector<2x1024xi32>
      %23 = arith.select %21, %19, %22 : vector<2x1024xi1>, vector<2x1024xi32>
      %cst_9 = arith.constant dense<2147483647> : vector<2xi32>
      %24 = vector.multi_reduction <minsi>, %23, %cst_9 [1] : vector<2x1024xi32> to vector<2xi32>
      %25 = vector.shape_cast %24 : vector<2xi32> to vector<2x1xi32>
      %26 = arith.sitofp %25 : vector<2x1xi32> to vector<2x1xf32>
      %cst_10 = arith.constant 9.990000e+02 : f32
      %27 = vector.broadcast %cst_10 : f32 to vector<2x1xf32>
      %28 = arith.subf %27, %26 : vector<2x1xf32>
      %c0_11 = arith.constant 0 : index
      %c0_12 = arith.constant 0 : index
      %29 = vector.load %arg5[%c0_11, %c0_12] : memref<2x1xf32, #tpu.memory_space<vmem>>, vector<2x1xf32>
      tpu.vector_store %arg5[%c0_11, %c0_12], %28 {strides = array<i32>} : memref<2x1xf32, #tpu.memory_space<vmem>>, vector<2x1xf32>,
    } else {
    }
    return
  }
  func.func @transform_0(%arg0: i32) -> (i32, i32) {
    %c0_i32 = arith.constant 0 : i32
    %c0_i32_0 = arith.constant 0 : i32
    %c0_i32_1 = arith.constant 0 : i32
    return %c0_i32, %c0_i32_0 : i32, i32
  }
  func.func @transform_1(%arg0: i32) -> (i32, i32) {
    %c0_i32 = arith.constant 0 : i32
    %c0_i32_0 = arith.constant 0 : i32
    %c0_i32_1 = arith.constant 0 : i32
    return %c0_i32, %c0_i32_0 : i32, i32
  }
  func.func @transform_2(%arg0: i32) -> (i32, i32) {
    %c0_i32 = arith.constant 0 : i32
    %c0_i32_0 = arith.constant 0 : i32
    return %c0_i32, %arg0 : i32, i32
  }
  func.func @transform_3(%arg0: i32) -> (i32, i32) {
    %c0_i32 = arith.constant 0 : i32
    %c0_i32_0 = arith.constant 0 : i32
    return %c0_i32, %arg0 : i32, i32
  }
  func.func @transform_4(%arg0: i32) -> (i32, i32) {
    %c0_i32 = arith.constant 0 : i32
    %c0_i32_0 = arith.constant 0 : i32
    %c0_i32_1 = arith.constant 0 : i32
    return %c0_i32, %c0_i32_0 : i32, i32
  }
}

</mosaic_0001>

<llo_original>
// kernel: _precondition_inputs_jit.1
$region0: #{_precondition_inputs_jit.1}
  #allocation0 [shape = 'u32[]', space=smem, size = 0x4, offset = 0x4, fixed_abs, tag = 'smem constant byte address 0x4 - core index']
  #allocation1 [shape = 'u32[144,128]{1,0:T(1,128)}', space=vmem, size = 0x12000, scoped, tag = 'internal scratch']
  %s0 = inlined_call_operand.vmem [shape: f32[2,1], index: 0, kind: input, shape index: {}]
  %s1 = inlined_call_operand.vmem [shape: f32[1,1024], index: 1, kind: input, shape index: {}]
  %s2 = inlined_call_operand.vmem [shape: f32[2,1024], index: 2, kind: input, shape index: {}]
  %s3 = inlined_call_operand.vmem [shape: f32[2,1024], index: 3, kind: output, shape index: {0}]
  %s4 = inlined_call_operand.vmem [shape: f32[2,1], index: 4, kind: output, shape index: {1}]
  %5 = xla_tuple %s3, %s4
  %s6 = sld [smem:[#allocation0]]
  $region57: #{_precondition_inputs_jit.1} parent=0
    _
  %s8 = ssub.s32 1, %s6
  %s9 = scalar_select 0, %s8, %s6
  loop: start=0, step=1, limit=4
  $region2: #{_precondition_inputs_jit.1} parent=0 // loop_pre_header
    _
  $region3: #{_precondition_inputs_jit.1} parent=0 // loop_header
    %s11 = sphi 0, %s15
    %p12 = scmp.ge.s32.totalorder %s11, 4
    %s19 = sphi 0, %s19
    %s21 = sphi 0, %s19
    %s22 = sphi 0, %s21
    %s36 = sphi 0, %s22
    %s40 = sphi 0, %s40
    %s42 = sphi 0, %s40
    %s43 = sphi 0, %s42
    %s57 = sphi 0, %s43
    %s63 = sphi 0, %s65
    %s66 = sphi 0, %s63
    %s67 = sphi 0, %s66
    %s83 = sphi 0, %s67
    %s89 = sphi 0, %s91
    %s92 = sphi 0, %s89
    %s93 = sphi 0, %s92
    %s109 = sphi 0, %s93
    %s113 = sphi 0, %s113
    %s115 = sphi 0, %s113
    %s116 = sphi 0, %s115
    %s130 = sphi 0, %s116
  $region4: #{_precondition_inputs_jit.1} parent=0 // loop_header_branch
    %14 = sbr.rel (%p12) target = $region8
  $region5: #{_precondition_inputs_jit.1} parent=0 // loop_body
    %s16 = ssub.s32 %s11, 1
    %s17 = ssub.s32 %s11, 2
    %s18 = sadd.s32 %s11, 1
    %s20 = sadd.s32 %s19, 1
    %p23 = scmp.eq.s32.totalorder %s11, 1
    %p24 = scmp.ne.s32.totalorder %s19, %s21
    %p25 = scmp.eq.s32.totalorder %s11, 0
    %p26 = por %p24, %p25
    %p27 = scmp.ne.s32.totalorder %s19, %s21
    %p28 = scmp.eq.s32.totalorder %s16, 1
    %p29 = por %p27, %p28
    %p30 = scmp.ne.s32.totalorder %s21, %s22
    %p31 = scmp.eq.s32.totalorder %s16, 0
    %p32 = por %p30, %p31
    %p33 = scmp.ne.s32.totalorder %s21, %s22
    %p34 = scmp.eq.s32.totalorder %s17, 1
    %p35 = por %p33, %p34
    %p37 = scmp.ne.s32.totalorder %s22, %s36
    %p38 = scmp.eq.s32.totalorder %s17, 0
    %p39 = por %p37, %p38
    %s41 = sadd.s32 %s40, 1
    %p44 = scmp.eq.s32.totalorder %s11, 1
    %p45 = scmp.ne.s32.totalorder %s40, %s42
    %p46 = scmp.eq.s32.totalorder %s11, 0
    %p47 = por %p45, %p46
    %p48 = scmp.ne.s32.totalorder %s40, %s42
    %p49 = scmp.eq.s32.totalorder %s16, 1
    %p50 = por %p48, %p49
    %p51 = scmp.ne.s32.totalorder %s42, %s43
    %p52 = scmp.eq.s32.totalorder %s16, 0
    %p53 = por %p51, %p52
    %p54 = scmp.ne.s32.totalorder %s42, %s43
    %p55 = scmp.eq.s32.totalorder %s17, 1
    %p56 = por %p54, %p55
    %p58 = scmp.ne.s32.totalorder %s43, %s57
    %p59 = scmp.eq.s32.totalorder %s17, 0
    %p60 = por %p58, %p59
    %s61 = ssub.s32 %s11, %s18
    %p62 = scmp.eq.s32.totalorder %s61, 0
    %s64 = sadd.s32 %s63, 1
    %s65 = scalar_select %p62, %s63, %s64
    %p68 = pneg %p62
    %p69 = scmp.eq.s32.totalorder %s11, 1
    %p70 = por %p68, %p69
    %p71 = scmp.ne.s32.totalorder %s63, %s66
    %p72 = scmp.eq.s32.totalorder %s11, 0
    %p73 = por %p71, %p72
    %p74 = scmp.ne.s32.totalorder %s63, %s66
    %p75 = scmp.eq.s32.totalorder %s16, 1
    %p76 = por %p74, %p75
    %p77 = scmp.ne.s32.totalorder %s66, %s67
    %p78 = scmp.eq.s32.totalorder %s16, 0
    %p79 = por %p77, %p78
    %p80 = scmp.ne.s32.totalorder %s66, %s67
    %p81 = scmp.eq.s32.totalorder %s17, 1
    %p82 = por %p80, %p81
    %p84 = scmp.ne.s32.totalorder %s67, %s83
    %p85 = scmp.eq.s32.totalorder %s17, 0
    %p86 = por %p84, %p85
    %s87 = ssub.s32 %s11, %s18
    %p88 = scmp.eq.s32.totalorder %s87, 0
    %s90 = sadd.s32 %s89, 1
    %s91 = scalar_select %p88, %s89, %s90
    %p94 = pneg %p88
    %p95 = scmp.eq.s32.totalorder %s11, 1
    %p96 = por %p94, %p95
    %p97 = scmp.ne.s32.totalorder %s89, %s92
    %p98 = scmp.eq.s32.totalorder %s11, 0
    %p99 = por %p97, %p98
    %p100 = scmp.ne.s32.totalorder %s89, %s92
    %p101 = scmp.eq.s32.totalorder %s16, 1
    %p102 = por %p100, %p101
    %p103 = scmp.ne.s32.totalorder %s92, %s93
    %p104 = scmp.eq.s32.totalorder %s16, 0
    %p105 = por %p103, %p104
    %p106 = scmp.ne.s32.totalorder %s92, %s93
    %p107 = scmp.eq.s32.totalorder %s17, 1
    %p108 = por %p106, %p107
    %p110 = scmp.ne.s32.totalorder %s93, %s109
    %p111 = scmp.eq.s32.totalorder %s17, 0
    %p112 = por %p110, %p111
    %s114 = sadd.s32 %s113, 1
    %p117 = scmp.eq.s32.totalorder %s11, 1
    %p118 = scmp.ne.s32.totalorder %s113, %s115
    %p119 = scmp.eq.s32.totalorder %s11, 0
    %p120 = por %p118, %p119
    %p121 = scmp.ne.s32.totalorder %s113, %s115
    %p122 = scmp.eq.s32.totalorder %s16, 1
    %p123 = por %p121, %p122
    %p124 = scmp.ne.s32.totalorder %s115, %s116
    %p125 = scmp.eq.s32.totalorder %s16, 0
    %p126 = por %p124, %p125
    %p127 = scmp.ne.s32.totalorder %s115, %s116
    %p128 = scmp.eq.s32.totalorder %s17, 1
    %p129 = por %p127, %p128
    %p131 = scmp.ne.s32.totalorder %s116, %s130
    %p132 = scmp.eq.s32.totalorder %s17, 0
    %p133 = por %p131, %p132
    %p134 = scmp.le.s32.totalorder 1, %s11
    %p135 = scmp.lt.s32.totalorder %s11, 3
    %p136 = pnand %p134, %p135
    %p137 = pneg %p136
    // Predicated region
    $region9: #{_precondition_inputs_jit.1} parent=5 // pred_check
      _
    $region10: #{_precondition_inputs_jit.1} parent=5 // pred_check_branch
      %139 = sbr.rel (%p136) target = $region12
    $region11: #{_precondition_inputs_jit.1} parent=5 // pred_region
      %s140 = ssub.s32 %s11, 1
      // Predicated region
      $region13: #{_precondition_inputs_jit.1} parent=11 // pred_check
        %p141 = pneg %p32
      $region14: #{_precondition_inputs_jit.1} parent=11 // pred_check_branch
        %143 = sbr.rel (%p141) target = $region16
      $region15: #{_precondition_inputs_jit.1} parent=11 // pred_region
        _
      $region16: #{_precondition_inputs_jit.1} parent=11 // pred_fallthru
        _
      // Predicated region
      $region17: #{_precondition_inputs_jit.1} parent=11 // pred_check
        %p144 = pneg %p53
      $region18: #{_precondition_inputs_jit.1} parent=11 // pred_check_branch
        %146 = sbr.rel (%p144) target = $region20
      $region19: #{_precondition_inputs_jit.1} parent=11 // pred_region
        _
      $region20: #{_precondition_inputs_jit.1} parent=11 // pred_fallthru
        _
    $region12: #{_precondition_inputs_jit.1} parent=5 // pred_fallthru
      _
    %p147 = scmp.lt.s32.totalorder %s11, 2
    // Predicated region
    $region21: #{_precondition_inputs_jit.1} parent=5 // pred_check
      %p148 = pneg %p147
    $region22: #{_precondition_inputs_jit.1} parent=5 // pred_check_branch
      %150 = sbr.rel (%p148) target = $region24
    $region23: #{_precondition_inputs_jit.1} parent=5 // pred_region
      // Predicated region
      $region25: #{_precondition_inputs_jit.1} parent=23 // pred_check
        %p151 = pneg %p73
      $region26: #{_precondition_inputs_jit.1} parent=23 // pred_check_branch
        %153 = sbr.rel (%p151) target = $region28
      $region27: #{_precondition_inputs_jit.1} parent=23 // pred_region
        %s154 = smul.u32 4, %s11
        %p155 = scmp.lt.s32.totalorder %s154, 7
        %s156 = scalar_select %p155, %s154, 7
        %s157 = smul.addr %s156, 2
        %s158 = scalar_lea.vmem %s2, %s157
        %s159 = smul.u32 4, %s11
      $region28: #{_precondition_inputs_jit.1} parent=23 // pred_fallthru
        _
    $region24: #{_precondition_inputs_jit.1} parent=5 // pred_fallthru
      _
    %p160 = scmp.le.s32.totalorder 1, %s11
    %p161 = scmp.lt.s32.totalorder %s11, 3
    %p162 = pnand %p160, %p161
    %p163 = pneg %p162
    // Predicated region
    $region29: #{_precondition_inputs_jit.1} parent=5 // pred_check
      _
    $region30: #{_precondition_inputs_jit.1} parent=5 // pred_check_branch
      %165 = sbr.rel (%p162) target = $region32
    $region31: #{_precondition_inputs_jit.1} parent=5 // pred_region
      %s166 = ssub.s32 %s11, 1
      %p167 = pneg %p32
      %p168 = pneg %p29
      %p169 = pneg %p53
      %p170 = pneg %p50
      %s171 = smul.u32 4, %s16
      %p172 = scmp.lt.s32.totalorder %s171, 7
      %s173 = scalar_select %p172, %s171, 7
      %s174 = smul.addr %s173, 2
      %s175 = scalar_lea.vmem %s2, %s174
      %p176 = pneg %p79
      %p177 = pneg %p76
      %p178 = pneg %p105
      %p179 = pneg %p102
      %s180 = smul.u32 4, %s16
      %p181 = scmp.lt.s32.totalorder %s180, 7
      %s182 = scalar_select %p181, %s180, 7
      %s183 = smul.addr %s182, 2
      %s184 = scalar_lea.vmem %s3, %s183
      %p185 = pneg %p126
      %p186 = pneg %p123
      %s187 = smul.u32 4, %s16
      %p188 = scmp.lt.s32.totalorder %s187, 7
      %s189 = scalar_select %p188, %s187, 7
      %s190 = smul.addr %s189, 2
      %s191 = scalar_lea.vmem %s2, %s190
      %s192 = smul.u32 4, %s16
      %s193 = smul.u32 4, %s16
      %p194 = scmp.lt.s32.totalorder %s193, 7
      %s195 = scalar_select %p194, %s193, 7
      %s196 = smul.addr %s195, 2
      %s197 = scalar_lea.vmem %s3, %s196
      %s198 = smul.u32 4, %s16
      %v199 = vld [vmem:[%s0] sm:$0x3]
      %v200 = vmul.f32 %v199, %v199
      %v201 = vadd.f32 %v200, 1.0
      %v202 = vrsqrt.pop %v201
      %v203 = vld [vmem:[%s191] sm:$0xff]
      %205 = vset.pattern.permute.xlu0 0
      %206 = vperm.xlu0 %205, %v202
      %v207 = vpop.permute.xlu0 %206
      %v210 = vcombine.high %v203, %v203
      %v212 = vunpack.c.l.s4 1983009808
      %v213 = vunpack.c.0.s8 %v212
      %v214 = vlaneseq
      %v215 = vshrl.u32 %v214, 7
      %v216 = vsub.s32 %v213, %v215
      %v217 = vrot.slane %v203, %v216
      %v219 = vunpack.c.l.s4 1983009808
      %v220 = vunpack.c.0.s8 %v219
      %v221 = vlaneseq
      %v222 = vshrl.u32 %v221, 7
      %v223 = vsub.s32 %v220, %v222
      %v224 = vrot.slane %v210, %v223
      %v225 = vcombine.high %v217, %v217
      %v226 = vcombine.high %v224, %v224
      %v231 = vmul.f32 %v207, %v217
      %v232 = vmul.f32 %v207, %v225
      %v233 = vmul.f32 %v207, %v224
      %v234 = vmul.f32 %v207, %v226
      %v239 = vcombine.low %v231, %v232
      %v240 = vcombine.low %v233, %v234
      %v242 = vunpack.c.l.s4 1983009808
      %v243 = vunpack.c.0.s8 %v242
      %v244 = vlaneseq
      %v245 = vshrl.u32 %v244, 7
      %v246 = vsub.s32 %v243, %v245
      %v247 = vrot.slane %v239, %v246
      %v249 = vunpack.c.l.s4 1983009808
      %v250 = vunpack.c.0.s8 %v249
      %v251 = vlaneseq
      %v252 = vshrl.u32 %v251, 7
      %v253 = vsub.s32 %v250, %v252
      %v254 = vrot.slane %v240, %v253
      %v255 = vcombine.low %v247, %v254
      %257 = vst [vmem:[%s197] sm:$0xff] %v255
      %p258 = scmp.eq.s32.totalorder %s16, 0
      // Predicated region
      $region33: #{_precondition_inputs_jit.1} parent=31 // pred_check
        %p259 = pneg %p258
      $region34: #{_precondition_inputs_jit.1} parent=31 // pred_check_branch
        %261 = sbr.rel (%p259) target = $region36
      $region35: #{_precondition_inputs_jit.1} parent=31 // pred_region
        %v262 = vld [vmem:[%s1] sm:$0xff]
        %264 = vset.pattern.permute.xlu0 0
        %265 = vperm.xlu0 %264, %v199
        %v266 = vpop.permute.xlu0 %265
        %v269 = vlaneseq
        %v270 = vshrl.u32 %v269, 7
        %v271 = vsub.s32 0, %v270
        %v272 = vrot.slane %v262, %v271
        %v273 = vlaneseq
        %v274 = vshrl.u32 %v273, 7
        %v275 = vsub.s32 1, %v274
        %v276 = vrot.slane %v262, %v275
        %v277 = vlaneseq
        %v278 = vshrl.u32 %v277, 7
        %v279 = vsub.s32 2, %v278
        %v280 = vrot.slane %v262, %v279
        %v281 = vlaneseq
        %v282 = vshrl.u32 %v281, 7
        %v283 = vsub.s32 3, %v282
        %v284 = vrot.slane %v262, %v283
        %v285 = vlaneseq
        %v286 = vshrl.u32 %v285, 7
        %v287 = vsub.s32 4, %v286
        %v288 = vrot.slane %v262, %v287
        %v289 = vlaneseq
        %v290 = vshrl.u32 %v289, 7
        %v291 = vsub.s32 5, %v290
        %v292 = vrot.slane %v262, %v291
        %v293 = vlaneseq
        %v294 = vshrl.u32 %v293, 7
        %v295 = vsub.s32 6, %v294
        %v296 = vrot.slane %v262, %v295
        %v297 = vlaneseq
        %v298 = vshrl.u32 %v297, 7
        %v299 = vsub.s32 7, %v298
        %v300 = vrot.slane %v262, %v299
        %v309 = vsub.f32 %v266, %v272
        %v310 = vsub.f32 %v266, %v276
        %v311 = vsub.f32 %v266, %v280
        %v312 = vsub.f32 %v266, %v284
        %v313 = vsub.f32 %v266, %v288
        %v314 = vsub.f32 %v266, %v292
        %v315 = vsub.f32 %v266, %v296
        %v316 = vsub.f32 %v266, %v300
        %v317 = vand.u32 2147483647, %v309
        %v318 = vand.u32 2147483647, %v310
        %v319 = vand.u32 2147483647, %v311
        %v320 = vand.u32 2147483647, %v312
        %v321 = vand.u32 2147483647, %v313
        %v322 = vand.u32 2147483647, %v314
        %v323 = vand.u32 2147483647, %v315
        %v324 = vand.u32 2147483647, %v316
        %vm325 = vcmask 1041408
        %v326 = vsel %vm325, %v317, inf
        %v327 = vsel %vm325, %v318, inf
        %v328 = vsel %vm325, %v319, inf
        %v329 = vsel %vm325, %v320, inf
        %v330 = vsel %vm325, %v321, inf
        %v331 = vmin.f32 %v326, %v330
        %v332 = vsel %vm325, %v322, inf
        %v333 = vmin.f32 %v327, %v332
        %v334 = vsel %vm325, %v323, inf
        %v335 = vmin.f32 %v328, %v334
        %v336 = vsel %vm325, %v324, inf
        %v337 = vmin.f32 %v329, %v336
        %v338 = vmin.f32 %v331, %v333
        %v339 = vmin.f32 %v335, %v337
        %v340 = vmin.f32 %v338, %v339
        %341 = vmin.xlane.f32.xlu0 %v340
        %v342 = vpop.xlane.xlu0 %341
        %v343 = vlaneseq
        %v344 = vand.u32 %v343, 127
        %v345 = vadd.s32 %v344, 128
        %v346 = vadd.s32 %v344, 256
        %v347 = vadd.s32 %v344, 384
        %v348 = vadd.s32 %v344, 512
        %v349 = vadd.s32 %v344, 640
        %v350 = vadd.s32 %v344, 768
        %v351 = vadd.s32 %v344, 896
        %vm352 = vcmp.eq.f32.partialorder %v317, %v342
        %vm353 = vcmp.eq.f32.partialorder %v318, %v342
        %vm354 = vcmp.eq.f32.partialorder %v319, %v342
        %vm355 = vcmp.eq.f32.partialorder %v320, %v342
        %vm356 = vcmp.eq.f32.partialorder %v321, %v342
        %vm357 = vcmp.eq.f32.partialorder %v322, %v342
        %vm358 = vcmp.eq.f32.partialorder %v323, %v342
        %vm359 = vcmp.eq.f32.partialorder %v324, %v342
        %v360 = vsel %vm352, %v344, 1024
        %v361 = vsel %vm353, %v345, 1024
        %v362 = vsel %vm354, %v346, 1024
        %v363 = vsel %vm355, %v347, 1024
        %v364 = vsel %vm356, %v348, 1024
        %v365 = vsel %vm357, %v349, 1024
        %v366 = vsel %vm358, %v350, 1024
        %v367 = vsel %vm359, %v351, 1024
        %v368 = vsel %vm325, %v360, 2147483647
        %v369 = vsel %vm325, %v361, 2147483647
        %v370 = vsel %vm325, %v362, 2147483647
        %v371 = vsel %vm325, %v363, 2147483647
        %v372 = vsel %vm325, %v364, 2147483647
        %vm373 = vcmp.lt.s32.totalorder %v368, %v372
        %v374 = vsel %vm373, %v368, %v372
        %v375 = vsel %vm325, %v365, 2147483647
        %vm376 = vcmp.lt.s32.totalorder %v369, %v375
        %v377 = vsel %vm376, %v369, %v375
        %v378 = vsel %vm325, %v366, 2147483647
        %vm379 = vcmp.lt.s32.totalorder %v370, %v378
        %v380 = vsel %vm379, %v370, %v378
        %v381 = vsel %vm325, %v367, 2147483647
        %vm382 = vcmp.lt.s32.totalorder %v371, %v381
        %v383 = vsel %vm382, %v371, %v381
        %vm384 = vcmp.lt.s32.totalorder %v374, %v377
        %v385 = vsel %vm384, %v374, %v377
        %vm386 = vcmp.lt.s32.totalorder %v380, %v383
        %v387 = vsel %vm386, %v380, %v383
        %vm388 = vcmp.lt.s32.totalorder %v385, %v387
        %v389 = vsel %vm388, %v385, %v387
        %v390 = vand.u32 %v389, 65535
        %v391 = vshra.s32 %v389, 16
        %v392 = vcvt.s32.f32 %v390
        %v393 = vcvt.s32.f32 %v391
        %394 = vmin.xlane.f32.xlu0 %v393
        %v395 = vpop.xlane.xlu0 %394
        %vm396 = vcmp.eq.f32.partialorder %v393, %v395
        %v397 = vsel %vm396, %v392, inf
        %398 = vmin.xlane.f32.xlu0 %v397
        %v399 = vpop.xlane.xlu0 %398
        %v400 = vcvt.f32.s32 %v399
        %v401 = vcvt.f32.s32 %v395
        %v402 = vshll.u32 %v401, 16
        %v403 = vadd.s32 %v402, %v400
        %v404 = vcvt.s32.f32 %v403
        %v405 = vsub.f32 999.0, %v404
        %vm406 = vcmask 1024
        %407 = vst.msk [vmem:[%s4] sm:$0x3] %vm406, %v405
      $region36: #{_precondition_inputs_jit.1} parent=31 // pred_fallthru
        _
      %s408 = smul.u32 4, %s16
      %p409 = scmp.lt.s32.totalorder %s408, 7
      %s410 = scalar_select %p409, %s408, 7
      %s411 = smul.addr %s410, 2
      %s412 = scalar_lea.vmem %s3, %s411
      // Predicated region
      $region37: #{_precondition_inputs_jit.1} parent=31 // pred_check
        %p413 = pneg %p102
      $region38: #{_precondition_inputs_jit.1} parent=31 // pred_check_branch
        %415 = sbr.rel (%p413) target = $region40
      $region39: #{_precondition_inputs_jit.1} parent=31 // pred_region
        %s416 = smul.u32 4, %s16
      $region40: #{_precondition_inputs_jit.1} parent=31 // pred_fallthru
        _
      // Predicated region
      $region41: #{_precondition_inputs_jit.1} parent=31 // pred_check
        %p417 = pneg %p123
      $region42: #{_precondition_inputs_jit.1} parent=31 // pred_check_branch
        %419 = sbr.rel (%p417) target = $region44
      $region43: #{_precondition_inputs_jit.1} parent=31 // pred_region
        _
      $region44: #{_precondition_inputs_jit.1} parent=31 // pred_fallthru
        _
      // Predicated region
      $region45: #{_precondition_inputs_jit.1} parent=31 // pred_check
        %p420 = pneg %p123
      $region46: #{_precondition_inputs_jit.1} parent=31 // pred_check_branch
        %422 = sbr.rel (%p420) target = $region48
      $region47: #{_precondition_inputs_jit.1} parent=31 // pred_region
        _
      $region48: #{_precondition_inputs_jit.1} parent=31 // pred_fallthru
        _
    $region32: #{_precondition_inputs_jit.1} parent=5 // pred_fallthru
      _
    %p423 = scmp.le.s32.totalorder 2, %s11
    // Predicated region
    $region49: #{_precondition_inputs_jit.1} parent=5 // pred_check
      %p424 = pneg %p423
    $region50: #{_precondition_inputs_jit.1} parent=5 // pred_check_branch
      %426 = sbr.rel (%p424) target = $region52
    $region51: #{_precondition_inputs_jit.1} parent=5 // pred_region
      %s427 = ssub.s32 %s11, 2
      // Predicated region
      $region53: #{_precondition_inputs_jit.1} parent=51 // pred_check
        %p428 = pneg %p108
      $region54: #{_precondition_inputs_jit.1} parent=51 // pred_check_branch
        %430 = sbr.rel (%p428) target = $region56
      $region55: #{_precondition_inputs_jit.1} parent=51 // pred_region
        %s431 = smul.u32 4, %s17
        %p432 = scmp.lt.s32.totalorder %s431, 7
        %s433 = scalar_select %p432, %s431, 7
        %s434 = smul.addr %s433, 2
        %s435 = scalar_lea.vmem %s3, %s434
      $region56: #{_precondition_inputs_jit.1} parent=51 // pred_fallthru
        _
    $region52: #{_precondition_inputs_jit.1} parent=5 // pred_fallthru
      _
  $region6: #{_precondition_inputs_jit.1} parent=0 // loop_footer
    %s15 = sadd.s32 1, %s11
  $region7: #{_precondition_inputs_jit.1} parent=0 // loop_footer_branch
    %10 = sbr.rel target = $region3
  $region8: #{_precondition_inputs_jit.1} parent=0 // loop_exit
    _

</llo_original>
